<compile_context>
chip_gen: v5e
topology: v5e:2x2
jax: 0.10.0
libtpu: 0.0.40
codegen_flags: <defaults>
</compile_context>

<pallas_src>
import functools
import math

import jax
import jax.numpy as jnp
from jax.experimental import pallas as pl
from jax.experimental.pallas import tpu as pltpu

# Deterministic "module parameters" (set in __init__ of the PyTorch module).
S1_IDX = 3
WEIGHT = 5.0

_LANES = 128
_MAX_TILE_ROWS = 2048  # 2048 * 128 * 4 B = 1 MiB per f32 pipeline buffer


def _weighted_loss_kernel(pred_ref, tgt_ref, out_ref, *, s1_idx, weight, feat,
                          rows, tile_rows, steps_per_core, ragged,
                          use_global_index):
    c = pl.program_id(0)   # TensorCore split axis ("parallel")
    i = pl.program_id(1)   # streaming reduction axis ("arbitrary")

    @pl.when(i == 0)
    def _init():
        out_ref[...] = jnp.zeros_like(out_ref)

    b = c * steps_per_core + i          # global block index (scalar, SMEM math)

    # Cast right after load; all math/accumulation in f32.
    diff = pred_ref[...].astype(jnp.float32) - tgt_ref[...].astype(jnp.float32)
    sq = diff * diff

    # Weight mask.  The weighted PyTorch column is flat_index % feat == s1_idx.
    # Common case (feat divides 128): lane-only mask, grid-invariant.
    # General case: tile_rows*128 % feat == 0 is enforced by the wrapper, so
    # the within-tile flat index gives the same pattern in every tile (no
    # program_id, no overflow).  use_global_index is the fallback for huge
    # feature counts where that rounding would blow the tile size.
    if _LANES % feat == 0:
        col = jax.lax.broadcasted_iota(jnp.int32, sq.shape, 1)
        sel = (col % feat) == s1_idx
    else:
        r = jax.lax.broadcasted_iota(jnp.int32, sq.shape, 0)
        col = jax.lax.broadcasted_iota(jnp.int32, sq.shape, 1)
        flat = r * _LANES + col
        if use_global_index:
            flat = flat + b * (tile_rows * _LANES)
        sel = (flat % feat) == s1_idx
    sqw = jnp.where(sel, sq * jnp.float32(weight), sq)

    def partial_sum(x):
        # (tile_rows,128) -> (tile_rows//8, 8, 128): 8-row slabs are f32 vreg
        # boundaries, so this is a free view and the axis-0 sum is a pure VPU
        # add tree; the single (8,128) accumulator lives in the resident
        # output block (no per-vreg accumulator read-modify-write).
        return x.reshape(tile_rows // 8, 8, _LANES).sum(axis=0)

    if not ragged:
        # Steady state: unmasked, unconditional accumulate.
        out_ref[...] += partial_sum(sqw)
    else:
        valid = rows - b * tile_rows    # valid rows in this block (scalar)

        @pl.when(valid >= tile_rows)
        def _full():
            out_ref[...] += partial_sum(sqw)

        @pl.when(jnp.logical_and(valid > 0, valid < tile_rows))
        def _tail():
            ri = jax.lax.broadcasted_iota(jnp.int32, sqw.shape, 0)
            out_ref[...] += partial_sum(jnp.where(ri < valid, sqw, 0.0))
        # valid <= 0: fully out-of-range step (odd block count) -> skip.


def weighted_loss(pred, target, s1_idx=S1_IDX, weight=WEIGHT):
    assert pred.shape == target.shape and pred.ndim == 2
    B, F = pred.shape
    n_true = B * F

    itemsize = min(jnp.dtype(pred.dtype).itemsize,
                   jnp.dtype(target.dtype).itemsize)
    sub_mult = max(8, 32 // max(itemsize, 1))   # 8 (f32) / 16 (bf16) / 32 (i8)

    # Rows-per-tile must be a multiple of the sublane quantum and of the
    # weight-pattern period, so the mask is identical in every tile.
    period = F // math.gcd(F, _LANES)
    row_mult = sub_mult // math.gcd(sub_mult, period) * period
    use_global_index = False
    if row_mult > _MAX_TILE_ROWS:
        # Absurdly large feature count: fall back to global flat-index mask.
        row_mult = sub_mult
        use_global_index = True

    p = pred.reshape(-1)
    t = target.reshape(-1)
    n = n_true
    if n % _LANES != 0:
        # Rare path: pad the flat tail to a whole 128-lane row; padded zeros
        # contribute (0-0)^2 = 0.  Typical shapes (F=16, batch % 8 == 0) skip
        # this copy entirely.
        n = ((n + _LANES - 1) // _LANES) * _LANES
        p = jnp.pad(p, (0, n - n_true))
        t = jnp.pad(t, (0, n - n_true))
    rows = n // _LANES
    p = p.reshape(rows, _LANES)      # free view: same row-major linear layout
    t = t.reshape(rows, _LANES)
    if rows < row_mult:
        # Tiny input: a few zero rows so the single block meets the minimum
        # (sublane, lane) tile; negligible cost at this size.
        p = jnp.pad(p, ((0, row_mult - rows), (0, 0)))
        t = jnp.pad(t, ((0, row_mult - rows), (0, 0)))
        rows = row_mult

    tile_rows = (min(rows, _MAX_TILE_ROWS) // row_mult) * row_mult
    n_blocks = pl.cdiv(rows, tile_rows)
    steps_per_core = pl.cdiv(n_blocks, 2)       # leading axis = 2 TensorCores
    need_clamp = (2 * steps_per_core != n_blocks)
    ragged = need_clamp or (rows % tile_rows != 0)

    if need_clamp:
        # Keep block indices in-bounds for the (skipped) extra step of core 1;
        # the repeated index also lets the pipeline skip the redundant DMA.
        def in_index(c, i):
            return (jnp.minimum(c * steps_per_core + i, n_blocks - 1), 0)
    else:
        def in_index(c, i):
            return (c * steps_per_core + i, 0)

    kernel = functools.partial(
        _weighted_loss_kernel,
        s1_idx=int(s1_idx), weight=float(weight), feat=int(F),
        rows=int(rows), tile_rows=int(tile_rows),
        steps_per_core=int(steps_per_core), ragged=bool(ragged),
        use_global_index=bool(use_global_index))

    partials = pl.pallas_call(
        kernel,
        out_shape=jax.ShapeDtypeStruct((2, 8, _LANES), jnp.float32),
        grid=(2, int(steps_per_core)),
        in_specs=[
            pl.BlockSpec((tile_rows, _LANES), in_index),
            pl.BlockSpec((tile_rows, _LANES), in_index),
        ],
        # Per-core resident (8,128) partial-sum slab doubling as accumulator.
        out_specs=pl.BlockSpec((None, 8, _LANES), lambda c, i: (c, 0, 0)),
        compiler_params=pltpu.CompilerParams(
            dimension_semantics=("parallel", "arbitrary")),
        cost_estimate=pl.CostEstimate(
            flops=3 * n_true, transcendentals=0,
            bytes_accessed=n_true * (jnp.dtype(pred.dtype).itemsize
                                     + jnp.dtype(target.dtype).itemsize)
                           + 2 * 8 * _LANES * 4),
    )(p, t)

    # Tiny (2,8,128) slab: final reduce + mean over the TRUE element count.
    return jnp.sum(partials) / jnp.float32(n_true)


def weighted_loss_ref(pred, target, s1_idx=S1_IDX, weight=WEIGHT):
    """Pure-JAX reference mirroring the PyTorch forward."""
    loss = (pred.astype(jnp.float32) - target.astype(jnp.float32)) ** 2
    loss = loss.at[:, s1_idx].multiply(weight)
    return loss.mean()


if __name__ == "__main__":
    key = jax.random.PRNGKey(0)
    k1, k2, k3, k4, k5, k6, k7, k8, k9, k10 = jax.random.split(key, 10)

    # 1) Small (batch, features) shape consistent with the module's usage.
    B, F = 8, 16
    pred = jax.random.normal(k1, (B, F), jnp.float32)
    tgt = jax.random.normal(k2, (B, F), jnp.float32)
    out = jax.block_until_ready(weighted_loss(pred, tgt))
    ref = weighted_loss_ref(pred, tgt)
    assert jnp.allclose(out, ref, rtol=1e-5, atol=1e-6), (out, ref)

    # 2) Larger batch: multi-step grid per core, ragged tail, clamped index.
    pred2 = jax.random.normal(k3, (40000, F), jnp.float32)
    tgt2 = jax.random.normal(k4, (40000, F), jnp.float32)
    out2 = jax.block_until_ready(weighted_loss(pred2, tgt2))
    ref2 = weighted_loss_ref(pred2, tgt2)
    assert jnp.allclose(out2, ref2, rtol=1e-4, atol=1e-6), (out2, ref2)

    # 3) bf16 inputs stream at half HBM traffic; accumulation stays f32.
    pred3 = jax.random.normal(k5, (4096, F), jnp.float32).astype(jnp.bfloat16)
    tgt3 = jax.random.normal(k6, (4096, F), jnp.float32).astype(jnp.bfloat16)
    out3 = jax.block_until_ready(weighted_loss(pred3, tgt3))
    ref3 = weighted_loss_ref(pred3, tgt3)
    assert jnp.allclose(out3, ref3, rtol=1e-3, atol=1e-5), (out3, ref3)

    # 4) Feature count that does not divide 128 (general weight-mask path).
    pred4 = jax.random.normal(k7, (640, 10), jnp.float32)
    tgt4 = jax.random.normal(k8, (640, 10), jnp.float32)
    out4 = jax.block_until_ready(weighted_loss(pred4, tgt4, s1_idx=7))
    ref4 = weighted_loss_ref(pred4, tgt4, s1_idx=7)
    assert jnp.allclose(out4, ref4, rtol=1e-5, atol=1e-6), (out4, ref4)

    # 5) Huge feature count: global-index fallback + non-128-multiple padding.
    pred5 = jax.random.normal(k9, (10, 2049), jnp.float32)
    tgt5 = jax.random.normal(k10, (10, 2049), jnp.float32)
    out5 = jax.block_until_ready(weighted_loss(pred5, tgt5, s1_idx=3))
    ref5 = weighted_loss_ref(pred5, tgt5, s1_idx=3)
    assert jnp.allclose(out5, ref5, rtol=1e-5, atol=1e-6), (out5, ref5)

    print("KERNEL_OK")
</pallas_src>

<mosaic_0001>
module attributes {stable_mosaic.version = 11 : i64} {
  func.func @_weighted_loss_kernel(%arg0: i32, %arg1: i32, %arg2: memref<8x128xf32, #tpu.memory_space<vmem>>, %arg3: memref<8x128xf32, #tpu.memory_space<vmem>>, %arg4: memref<1x8x128xf32, #tpu.memory_space<vmem>>) attributes {dimension_semantics = [#tpu.dimension_semantics<parallel>, #tpu.dimension_semantics<arbitrary>], iteration_bounds = array<i64: 2, 1>, scalar_prefetch = 0 : i64, scratch_operands = 0 : i64, tpu.core_type = #tpu.core_type<tc>, window_params = [{transform_indices = @transform_0, window_bounds = array<i64: 8, 128>}, {transform_indices = @transform_1, window_bounds = array<i64: 8, 128>}, {transform_indices = @transform_2, window_bounds = array<i64: 1, 8, 128>}]} {
    %c0_i32 = arith.constant 0 : i32
    %0 = arith.cmpi eq, %arg1, %c0_i32 : i32
    %1 = arith.extui %0 : i1 to i32
    %c0_i32_0 = arith.constant 0 : i32
    %2 = arith.cmpi ne, %1, %c0_i32_0 : i32
    scf.if %2 {
      %cst_15 = arith.constant 0.000000e+00 : f32
      %41 = vector.broadcast %cst_15 : f32 to vector<8x128xf32>
      %c0_16 = arith.constant 0 : index
      %c0_17 = arith.constant 0 : index
      %c0_18 = arith.constant 0 : index
      %42 = vector.load %arg4[%c0_16, %c0_17, %c0_18] : memref<1x8x128xf32, #tpu.memory_space<vmem>>, vector<1x8x128xf32>
      %43 = vector.shape_cast %42 : vector<1x8x128xf32> to vector<8x128xf32>
      %44 = vector.shape_cast %41 : vector<8x128xf32> to vector<1x8x128xf32>
      tpu.vector_store %arg4[%c0_16, %c0_17, %c0_18], %44 {strides = array<i32>} : memref<1x8x128xf32, #tpu.memory_space<vmem>>, vector<1x8x128xf32>,
    } else {
    }
    %c1_i32 = arith.constant 1 : i32
    %3 = arith.muli %arg0, %c1_i32 : i32
    %4 = arith.addi %3, %arg1 : i32
    %c0 = arith.constant 0 : index
    %c0_1 = arith.constant 0 : index
    %5 = vector.load %arg2[%c0, %c0_1] : memref<8x128xf32, #tpu.memory_space<vmem>>, vector<8x128xf32>
    %c0_2 = arith.constant 0 : index
    %c0_3 = arith.constant 0 : index
    %6 = vector.load %arg3[%c0_2, %c0_3] : memref<8x128xf32, #tpu.memory_space<vmem>>, vector<8x128xf32>
    %7 = arith.subf %5, %6 : vector<8x128xf32>
    %8 = arith.mulf %7, %7 : vector<8x128xf32>
    %9 = tpu.iota {dimensions = array<i32: 1>} : vector<8x128xi32>
    %c16_i32 = arith.constant 16 : i32
    %c0_i32_4 = arith.constant 0 : i32
    %10 = arith.cmpi eq, %c16_i32, %c0_i32_4 : i32
    %c1_i32_5 = arith.constant 1 : i32
    %11 = arith.select %10, %c1_i32_5, %c16_i32 : i32
    %12 = vector.broadcast %11 : i32 to vector<8x128xi32>
    %13 = arith.remsi %9, %12 : vector<8x128xi32>
    %c0_i32_6 = arith.constant 0 : i32
    %14 = vector.broadcast %c0_i32_6 : i32 to vector<8x128xi32>
    %15 = arith.cmpi ne, %13, %14 : vector<8x128xi32>
    %c0_i32_7 = arith.constant 0 : i32
    %16 = vector.broadcast %c0_i32_7 : i32 to vector<8x128xi32>
    %17 = arith.cmpi slt, %13, %16 : vector<8x128xi32>
    %c0_i32_8 = arith.constant 0 : i32
    %18 = arith.cmpi slt, %11, %c0_i32_8 : i32
    %19 = vector.broadcast %18 : i1 to vector<8x128xi1>
    %20 = vector.broadcast %19 : vector<8x128xi1> to vector<8x128xi1>
    %21 = arith.xori %17, %20 : vector<8x128xi1>
    %22 = arith.andi %21, %15 : vector<8x128xi1>
    %23 = vector.broadcast %11 : i32 to vector<8x128xi32>
    %24 = arith.addi %13, %23 : vector<8x128xi32>
    %25 = arith.select %22, %24, %13 : vector<8x128xi1>, vector<8x128xi32>
    %c3_i32 = arith.constant 3 : i32
    %26 = vector.broadcast %c3_i32 : i32 to vector<8x128xi32>
    %27 = arith.cmpi eq, %25, %26 : vector<8x128xi32>
    %cst = arith.constant 5.000000e+00 : f32
    %28 = vector.broadcast %cst : f32 to vector<8x128xf32>
    %29 = arith.mulf %8, %28 : vector<8x128xf32>
    %30 = arith.select %27, %29, %8 : vector<8x128xi1>, vector<8x128xf32>
    %c8_i32 = arith.constant 8 : i32
    %31 = arith.muli %4, %c8_i32 : i32
    %c8_i32_9 = arith.constant 8 : i32
    %32 = arith.subi %c8_i32_9, %31 : i32
    %c8_i32_10 = arith.constant 8 : i32
    %33 = arith.cmpi sge, %32, %c8_i32_10 : i32
    %34 = arith.extui %33 : i1 to i32
    %c0_i32_11 = arith.constant 0 : i32
    %35 = arith.cmpi ne, %34, %c0_i32_11 : i32
    scf.if %35 {
      %c0_15 = arith.constant 0 : index
      %c0_16 = arith.constant 0 : index
      %c0_17 = arith.constant 0 : index
      %41 = vector.load %arg4[%c0_15, %c0_16, %c0_17] : memref<1x8x128xf32, #tpu.memory_space<vmem>>, vector<1x8x128xf32>
      %42 = vector.shape_cast %41 : vector<1x8x128xf32> to vector<8x128xf32>
      %43 = vector.shape_cast %30 : vector<8x128xf32> to vector<1x8x128xf32>
      %cst_18 = arith.constant dense<0.000000e+00> : vector<8x128xf32>
      %44 = vector.multi_reduction <add>, %43, %cst_18 [0] : vector<1x8x128xf32> to vector<8x128xf32>
      %45 = arith.addf %42, %44 : vector<8x128xf32>
      %c0_19 = arith.constant 0 : index
      %c0_20 = arith.constant 0 : index
      %c0_21 = arith.constant 0 : index
      %46 = vector.load %arg4[%c0_19, %c0_20, %c0_21] : memref<1x8x128xf32, #tpu.memory_space<vmem>>, vector<1x8x128xf32>
      %47 = vector.shape_cast %46 : vector<1x8x128xf32> to vector<8x128xf32>
      %48 = vector.shape_cast %45 : vector<8x128xf32> to vector<1x8x128xf32>
      tpu.vector_store %arg4[%c0_19, %c0_20, %c0_21], %48 {strides = array<i32>} : memref<1x8x128xf32, #tpu.memory_space<vmem>>, vector<1x8x128xf32>,
    } else {
    }
    %c0_i32_12 = arith.constant 0 : i32
    %36 = arith.cmpi sgt, %32, %c0_i32_12 : i32
    %c8_i32_13 = arith.constant 8 : i32
    %37 = arith.cmpi slt, %32, %c8_i32_13 : i32
    %38 = arith.andi %36, %37 : i1
    %39 = arith.extui %38 : i1 to i32
    %c0_i32_14 = arith.constant 0 : i32
    %40 = arith.cmpi ne, %39, %c0_i32_14 : i32
    scf.if %40 {
      %41 = tpu.iota {dimensions = array<i32: 0>} : vector<8x128xi32>
      %c0_15 = arith.constant 0 : index
      %c0_16 = arith.constant 0 : index
      %c0_17 = arith.constant 0 : index
      %42 = vector.load %arg4[%c0_15, %c0_16, %c0_17] : memref<1x8x128xf32, #tpu.memory_space<vmem>>, vector<1x8x128xf32>
      %43 = vector.shape_cast %42 : vector<1x8x128xf32> to vector<8x128xf32>
      %44 = vector.broadcast %32 : i32 to vector<8x128xi32>
      %45 = arith.cmpi slt, %41, %44 : vector<8x128xi32>
      %cst_18 = arith.constant 0.000000e+00 : f32
      %46 = vector.broadcast %cst_18 : f32 to vector<8x128xf32>
      %47 = arith.select %45, %30, %46 : vector<8x128xi1>, vector<8x128xf32>
      %48 = vector.shape_cast %47 : vector<8x128xf32> to vector<1x8x128xf32>
      %cst_19 = arith.constant dense<0.000000e+00> : vector<8x128xf32>
      %49 = vector.multi_reduction <add>, %48, %cst_19 [0] : vector<1x8x128xf32> to vector<8x128xf32>
      %50 = arith.addf %43, %49 : vector<8x128xf32>
      %c0_20 = arith.constant 0 : index
      %c0_21 = arith.constant 0 : index
      %c0_22 = arith.constant 0 : index
      %51 = vector.load %arg4[%c0_20, %c0_21, %c0_22] : memref<1x8x128xf32, #tpu.memory_space<vmem>>, vector<1x8x128xf32>
      %52 = vector.shape_cast %51 : vector<1x8x128xf32> to vector<8x128xf32>
      %53 = vector.shape_cast %50 : vector<8x128xf32> to vector<1x8x128xf32>
      tpu.vector_store %arg4[%c0_20, %c0_21, %c0_22], %53 {strides = array<i32>} : memref<1x8x128xf32, #tpu.memory_space<vmem>>, vector<1x8x128xf32>,
    } else {
    }
    return
  }
  func.func @transform_0(%arg0: i32, %arg1: i32) -> (i32, i32) {
    %c1_i32 = arith.constant 1 : i32
    %0 = arith.muli %arg0, %c1_i32 : i32
    %1 = arith.addi %0, %arg1 : i32
    %c0_i32 = arith.constant 0 : i32
    %2 = arith.minsi %1, %c0_i32 : i32
    %c0_i32_0 = arith.constant 0 : i32
    %c0_i32_1 = arith.constant 0 : i32
    return %2, %c0_i32_0 : i32, i32
  }
  func.func @transform_1(%arg0: i32, %arg1: i32) -> (i32, i32) {
    %c1_i32 = arith.constant 1 : i32
    %0 = arith.muli %arg0, %c1_i32 : i32
    %1 = arith.addi %0, %arg1 : i32
    %c0_i32 = arith.constant 0 : i32
    %2 = arith.minsi %1, %c0_i32 : i32
    %c0_i32_0 = arith.constant 0 : i32
    %c0_i32_1 = arith.constant 0 : i32
    return %2, %c0_i32_0 : i32, i32
  }
  func.func @transform_2(%arg0: i32, %arg1: i32) -> (i32, i32, i32) {
    %c0_i32 = arith.constant 0 : i32
    %c0_i32_0 = arith.constant 0 : i32
    %c0_i32_1 = arith.constant 0 : i32
    return %arg0, %c0_i32, %c0_i32_0 : i32, i32, i32
  }
}

</mosaic_0001>

<llo_original>
// kernel: tpu_custom_call.1
$region0: #{tpu_custom_call.1}
  #allocation0 [shape = 'u32[]', space=smem, size = 0x4, offset = 0x4, fixed_abs, tag = 'smem constant byte address 0x4 - core index']
  #allocation1 [shape = 'u32[72,128]{1,0:T(1,128)}', space=vmem, size = 0x9000, scoped, tag = 'internal scratch']
  %s0 = inlined_call_operand.hbm [shape: f32[8,128], index: 0, kind: input, shape index: {}]
  %s1 = inlined_call_operand.hbm [shape: f32[8,128], index: 1, kind: input, shape index: {}]
  %s2 = inlined_call_operand.hbm [shape: f32[2,8,128], index: 2, kind: output, shape index: {}]
  %s3 = sld [smem:[#allocation0]]
  $region61: #{tpu_custom_call.1} parent=0
    _
  %s5 = ssub.s32 1, %s3
  %s6 = scalar_select 0, %s5, %s3
  $region1: #{tpu_custom_call.1} parent=0
    #allocation2 [shape = 'u8[8192]{0}', space=vmem, size = 0x2000, scoped, tag = 'input window, operand 0']
    #allocation3 [shape = 's32[2]{0}', space=sflag, size = 0x8, scoped, tag = 'scoped memory for tpu_custom_call.1']
    #allocation4 [shape = 's32[2]{0}', space=sflag, size = 0x8, scoped, tag = 'scoped memory for tpu_custom_call.1']
    #allocation5 [shape = 'u8[8192]{0}', space=vmem, size = 0x2000, scoped, tag = 'input window, operand 1']
    #allocation6 [shape = 's32[2]{0}', space=sflag, size = 0x8, scoped, tag = 'scoped memory for tpu_custom_call.1']
    #allocation7 [shape = 'u8[8192]{0}', space=vmem, size = 0x2000, scoped, tag = 'output window, operand 0']
    %7 = vsyncpa [#allocation3], 0
    %s8 = scalar_lea.sflag [#allocation3], 1
    %9 = vsyncpa %s8, 0
    %10 = vsyncpa [#allocation6], 0
    %s11 = scalar_lea.sflag [#allocation6], 1
    %12 = vsyncpa %s11, 0
    %13 = vsyncpa [#allocation4], 0
    %s14 = scalar_lea.sflag [#allocation4], 1
    %15 = vsyncpa %s14, 0
    loop: start=0, step=1, limit=4
    $region2: #{tpu_custom_call.1} parent=1 // loop_pre_header
      _
    $region3: #{tpu_custom_call.1} parent=1 // loop_header
      %s17 = sphi 0, %s21
      %p18 = scmp.ge.s32.totalorder %s17, 4
      %s24 = sphi 0, %s36
      %s25 = sphi 0, %s32
      %s26 = sphi 0, %s24
      %s27 = sphi 0, %s25
      %s28 = sphi 0, %s26
      %s29 = sphi 0, %s27
      %s45 = sphi 0, %s47
      %s48 = sphi 0, %s45
      %s49 = sphi 0, %s48
      %s65 = sphi 0, %s49
      %s77 = sphi 0, %s79
      %s80 = sphi 0, %s77
      %s81 = sphi 0, %s80
      %s97 = sphi 0, %s81
      %s103 = sphi 0, %s105
      %s106 = sphi 0, %s103
      %s107 = sphi 0, %s106
      %s123 = sphi 0, %s107
    $region4: #{tpu_custom_call.1} parent=1 // loop_header_branch
      %20 = sbr.rel (%p18) target = $region8
    $region5: #{tpu_custom_call.1} parent=1 // loop_body
      %s22 = ssub.s32 %s17, 1
      %s23 = ssub.s32 %s17, 2
      %s30 = sadd.s32 1, %s25
      %p31 = scmp.ge.s32.totalorder %s30, 1
      %s32 = scalar_select %p31, 0, %s30
      %s33 = sadd.s32 1, %s24
      %s34 = scalar_select %p31, %s33, %s24
      %p35 = scmp.ge.s32.totalorder %s34, 2
      %s36 = scalar_select %p35, 0, %s34
      %s37 = sadd.s32 %s24, %s25
      %p38 = scmp.lt.s32.totalorder %s37, 0
      %s39 = scalar_select %p38, %s37, 0
      %s40 = sadd.s32 %s36, %s32
      %p41 = scmp.lt.s32.totalorder %s40, 0
      %s42 = scalar_select %p41, %s40, 0
      %s43 = ssub.s32 %s39, %s42
      %p44 = scmp.eq.s32.totalorder %s43, 0
      %s46 = sadd.s32 %s45, 1
      %s47 = scalar_select %p44, %s45, %s46
      %p50 = pneg %p44
      %p51 = scmp.eq.s32.totalorder %s17, 1
      %p52 = por %p50, %p51
      %p53 = scmp.ne.s32.totalorder %s45, %s48
      %p54 = scmp.eq.s32.totalorder %s17, 0
      %p55 = por %p53, %p54
      %p56 = scmp.ne.s32.totalorder %s45, %s48
      %p57 = scmp.eq.s32.totalorder %s22, 1
      %p58 = por %p56, %p57
      %p59 = scmp.ne.s32.totalorder %s48, %s49
      %p60 = scmp.eq.s32.totalorder %s22, 0
      %p61 = por %p59, %p60
      %p62 = scmp.ne.s32.totalorder %s48, %s49
      %p63 = scmp.eq.s32.totalorder %s23, 1
      %p64 = por %p62, %p63
      %p66 = scmp.ne.s32.totalorder %s49, %s65
      %p67 = scmp.eq.s32.totalorder %s23, 0
      %p68 = por %p66, %p67
      %s69 = sadd.s32 %s24, %s25
      %p70 = scmp.lt.s32.totalorder %s69, 0
      %s71 = scalar_select %p70, %s69, 0
      %s72 = sadd.s32 %s36, %s32
      %p73 = scmp.lt.s32.totalorder %s72, 0
      %s74 = scalar_select %p73, %s72, 0
      %s75 = ssub.s32 %s71, %s74
      %p76 = scmp.eq.s32.totalorder %s75, 0
      %s78 = sadd.s32 %s77, 1
      %s79 = scalar_select %p76, %s77, %s78
      %p82 = pneg %p76
      %p83 = scmp.eq.s32.totalorder %s17, 1
      %p84 = por %p82, %p83
      %p85 = scmp.ne.s32.totalorder %s77, %s80
      %p86 = scmp.eq.s32.totalorder %s17, 0
      %p87 = por %p85, %p86
      %p88 = scmp.ne.s32.totalorder %s77, %s80
      %p89 = scmp.eq.s32.totalorder %s22, 1
      %p90 = por %p88, %p89
      %p91 = scmp.ne.s32.totalorder %s80, %s81
      %p92 = scmp.eq.s32.totalorder %s22, 0
      %p93 = por %p91, %p92
      %p94 = scmp.ne.s32.totalorder %s80, %s81
      %p95 = scmp.eq.s32.totalorder %s23, 1
      %p96 = por %p94, %p95
      %p98 = scmp.ne.s32.totalorder %s81, %s97
      %p99 = scmp.eq.s32.totalorder %s23, 0
      %p100 = por %p98, %p99
      %s101 = ssub.s32 %s24, %s36
      %p102 = scmp.eq.s32.totalorder %s101, 0
      %s104 = sadd.s32 %s103, 1
      %s105 = scalar_select %p102, %s103, %s104
      %p108 = pneg %p102
      %p109 = scmp.eq.s32.totalorder %s17, 1
      %p110 = por %p108, %p109
      %p111 = scmp.ne.s32.totalorder %s103, %s106
      %p112 = scmp.eq.s32.totalorder %s17, 0
      %p113 = por %p111, %p112
      %p114 = scmp.ne.s32.totalorder %s103, %s106
      %p115 = scmp.eq.s32.totalorder %s22, 1
      %p116 = por %p114, %p115
      %p117 = scmp.ne.s32.totalorder %s106, %s107
      %p118 = scmp.eq.s32.totalorder %s22, 0
      %p119 = por %p117, %p118
      %p120 = scmp.ne.s32.totalorder %s106, %s107
      %p121 = scmp.eq.s32.totalorder %s23, 1
      %p122 = por %p120, %p121
      %p124 = scmp.ne.s32.totalorder %s107, %s123
      %p125 = scmp.eq.s32.totalorder %s23, 0
      %p126 = por %p124, %p125
      %p127 = scmp.le.s32.totalorder 1, %s17
      %p128 = scmp.lt.s32.totalorder %s17, 3
      %p129 = pnand %p127, %p128
      %p130 = pneg %p129
      // Predicated region
      $region9: #{tpu_custom_call.1} parent=5 // pred_check
        _
      $region10: #{tpu_custom_call.1} parent=5 // pred_check_branch
        %132 = sbr.rel (%p129) target = $region12
      $region11: #{tpu_custom_call.1} parent=5 // pred_region
        %s133 = ssub.s32 %s17, 1
      $region12: #{tpu_custom_call.1} parent=5 // pred_fallthru
        _
      %p134 = scmp.lt.s32.totalorder %s17, 2
      // Predicated region
      $region13: #{tpu_custom_call.1} parent=5 // pred_check
        %p135 = pneg %p134
      $region14: #{tpu_custom_call.1} parent=5 // pred_check_branch
        %137 = sbr.rel (%p135) target = $region16
      $region15: #{tpu_custom_call.1} parent=5 // pred_region
        // Predicated region
        $region17: #{tpu_custom_call.1} parent=15 // pred_check
          %p138 = pneg %p55
        $region18: #{tpu_custom_call.1} parent=15 // pred_check_branch
          %140 = sbr.rel (%p138) target = $region20
        $region19: #{tpu_custom_call.1} parent=15 // pred_region
          %s141 = sand.u32 %s45, 1
          %s142 = scalar_lea.sflag [#allocation3], %s141
          %s143 = sand.u32 %s45, 1
          %s144 = smul.addr %s143, 8
          %s145 = scalar_lea.vmem [#allocation2], %s144
          %s146 = sadd.s32 %s24, %s25
          %p147 = scmp.lt.s32.totalorder %s146, 0
          %s148 = scalar_select %p147, %s146, 0
          %150 = vsyncadd %s142, 0
          %s151 = smul.addr %s148, 8
          %s152 = scalar_lea.hbm %s0, %s151
          %s154 = sshll.u32 %s152, 4
          %s155 = int_to_ptr.hbm [resolvable:$true] %s154
          %s156 = sshll.u32 %s145, 4
          %s157 = int_to_ptr.vmem [resolvable:$true] %s156
          %159 = dma.hbm_to_vmem [thread:$0]  %s155, 128, %s157, %s142
        $region20: #{tpu_custom_call.1} parent=15 // pred_fallthru
          _
        // Predicated region
        $region21: #{tpu_custom_call.1} parent=15 // pred_check
          %p160 = pneg %p87
        $region22: #{tpu_custom_call.1} parent=15 // pred_check_branch
          %162 = sbr.rel (%p160) target = $region24
        $region23: #{tpu_custom_call.1} parent=15 // pred_region
          %s163 = sand.u32 %s77, 1
          %s164 = scalar_lea.sflag [#allocation6], %s163
          %s165 = sand.u32 %s77, 1
          %s166 = smul.addr %s165, 8
          %s167 = scalar_lea.vmem [#allocation5], %s166
          %s168 = sadd.s32 %s24, %s25
          %p169 = scmp.lt.s32.totalorder %s168, 0
          %s170 = scalar_select %p169, %s168, 0
          %172 = vsyncadd %s164, 0
          %s173 = smul.addr %s170, 8
          %s174 = scalar_lea.hbm %s1, %s173
          %s176 = sshll.u32 %s174, 4
          %s177 = int_to_ptr.hbm [resolvable:$true] %s176
          %s178 = sshll.u32 %s167, 4
          %s179 = int_to_ptr.vmem [resolvable:$true] %s178
          %181 = dma.hbm_to_vmem [thread:$0]  %s177, 128, %s179, %s164
        $region24: #{tpu_custom_call.1} parent=15 // pred_fallthru
          _
      $region16: #{tpu_custom_call.1} parent=5 // pred_fallthru
        _
      %p182 = scmp.le.s32.totalorder 1, %s17
      %p183 = scmp.lt.s32.totalorder %s17, 3
      %p184 = pnand %p182, %p183
      %p185 = pneg %p184
      // Predicated region
      $region25: #{tpu_custom_call.1} parent=5 // pred_check
        _
      $region26: #{tpu_custom_call.1} parent=5 // pred_check_branch
        %187 = sbr.rel (%p184) target = $region28
      $region27: #{tpu_custom_call.1} parent=5 // pred_region
        %s188 = ssub.s32 %s17, 1
        %s189 = sand.u32 %s48, 1
        %s190 = scalar_lea.sflag [#allocation3], %s189
        %s191 = sand.u32 %s48, 1
        %s192 = smul.addr %s191, 8
        %s193 = scalar_lea.vmem [#allocation2], %s192
        // Predicated region
        $region29: #{tpu_custom_call.1} parent=27 // pred_check
          %p194 = pneg %p61
        $region30: #{tpu_custom_call.1} parent=27 // pred_check_branch
          %196 = sbr.rel (%p194) target = $region32
        $region31: #{tpu_custom_call.1} parent=27 // pred_region
          %198 = dma.done %s190, 128
        $region32: #{tpu_custom_call.1} parent=27 // pred_fallthru
          _
        %s199 = sand.u32 %s80, 1
        %s200 = scalar_lea.sflag [#allocation6], %s199
        %s201 = sand.u32 %s80, 1
        %s202 = smul.addr %s201, 8
        %s203 = scalar_lea.vmem [#allocation5], %s202
        // Predicated region
        $region33: #{tpu_custom_call.1} parent=27 // pred_check
          %p204 = pneg %p93
        $region34: #{tpu_custom_call.1} parent=27 // pred_check_branch
          %206 = sbr.rel (%p204) target = $region36
        $region35: #{tpu_custom_call.1} parent=27 // pred_region
          %208 = dma.done %s200, 128
        $region36: #{tpu_custom_call.1} parent=27 // pred_fallthru
          _
        %s209 = sand.u32 %s48, 1
        %s210 = scalar_lea.sflag [#allocation3], %s209
        %s211 = sand.u32 %s48, 1
        %s212 = smul.addr %s211, 8
        %s213 = scalar_lea.vmem [#allocation2], %s212
        %p214 = pneg %p61
        %p215 = pneg %p58
        %s216 = sand.u32 %s80, 1
        %s217 = scalar_lea.sflag [#allocation6], %s216
        %s218 = sand.u32 %s80, 1
        %s219 = smul.addr %s218, 8
        %s220 = scalar_lea.vmem [#allocation5], %s219
        %p221 = pneg %p93
        %p222 = pneg %p90
        %p223 = pneg %p119
        %p224 = pneg %p116
        %s225 = sand.u32 %s106, 1
        %s226 = scalar_lea.sflag [#allocation4], %s225
        %s227 = sand.u32 %s106, 1
        %s228 = smul.addr %s227, 8
        %s229 = scalar_lea.vmem [#allocation7], %s228
        %s230 = sadd.s32 %s26, %s27
        %p231 = scmp.lt.s32.totalorder %s230, 0
        %s232 = scalar_select %p231, %s230, 0
        %s233 = sadd.s32 %s26, %s27
        %p234 = scmp.lt.s32.totalorder %s233, 0
        %s235 = scalar_select %p234, %s233, 0
        %p236 = scmp.eq.s32.totalorder %s27, 0
        // Predicated region
        $region37: #{tpu_custom_call.1} parent=27 // pred_check
          %p237 = pneg %p236
        $region38: #{tpu_custom_call.1} parent=27 // pred_check_branch
          %239 = sbr.rel (%p237) target = $region40
        $region39: #{tpu_custom_call.1} parent=27 // pred_region
          %240 = vst [vmem:[%s229] sm:$0xff] 0.0
        $region40: #{tpu_custom_call.1} parent=27 // pred_fallthru
          _
        %s241 = sadd.s32 %s26, %s27
        %v242 = vld [vmem:[%s193] sm:$0xff]
        %v243 = vld [vmem:[%s203] sm:$0xff]
        %v244 = vsub.f32 %v242, %v243
        %v245 = vmul.f32 %v244, %v244
        %v246 = vlaneseq
        %v247 = vand.u32 %v246, 127
        %vm248 = vcmp.lt.s32.totalorder %v247, 0
        %v249 = vsub.s32 0, %v247
        %v250 = vsel %vm248, %v249, %v247
        %v251 = vshrl.u32 %v250, 4
        %v252 = vand.u32 %v250, 15
        %v253 = vsub.s32 0, %v252
        %v254 = vsel %vm248, %v253, %v252
        %vm255 = vcmp.ne.s32.totalorder %v254, 0
        %vm256 = vcmp.lt.s32.totalorder %v254, 0
        %vm257 = vmand %vm256, %vm255
        %v258 = vadd.s32 %v254, 16
        %v259 = vsel %vm257, %v258, %v254
        %vm260 = vcmp.eq.s32.totalorder %v259, 3
        %v261 = vmul.f32 %v245, 5.0
        %v262 = vsel %vm260, %v261, %v245
        %s263 = smul.u32 %s241, 8
        %s264 = ssub.s32 8, %s263
        %p265 = scmp.ge.s32.totalorder %s264, 8
        // Predicated region
        $region41: #{tpu_custom_call.1} parent=27 // pred_check
          %p266 = pneg %p265
        $region42: #{tpu_custom_call.1} parent=27 // pred_check_branch
          %268 = sbr.rel (%p266) target = $region44
        $region43: #{tpu_custom_call.1} parent=27 // pred_region
          %v269 = vld [vmem:[%s229] sm:$0xff]
          %v270 = vadd.f32 %v262, 0.0
          %v271 = vadd.f32 %v269, %v270
          %272 = vst [vmem:[%s229] sm:$0xff] %v271
        $region44: #{tpu_custom_call.1} parent=27 // pred_fallthru
          _
        %p273 = scmp.gt.s32.totalorder %s264, 0
        %p274 = scmp.lt.s32.totalorder %s264, 8
        %p275 = pnand %p273, %p274
        %p276 = pneg %p275
        // Predicated region
        $region45: #{tpu_custom_call.1} parent=27 // pred_check
          _
        $region46: #{tpu_custom_call.1} parent=27 // pred_check_branch
          %278 = sbr.rel (%p275) target = $region48
        $region47: #{tpu_custom_call.1} parent=27 // pred_region
          %v279 = vlaneseq
          %v280 = vshrl.u32 %v279, 7
          %v281 = vld [vmem:[%s229] sm:$0xff]
          %v282 = vstv %s264
          %vm283 = vcmp.lt.s32.totalorder %v280, %v282
          %v284 = vsel %vm283, %v262, 0.0
          %v285 = vadd.f32 %v284, 0.0
          %v286 = vadd.f32 %v281, %v285
          %287 = vst [vmem:[%s229] sm:$0xff] %v286
        $region48: #{tpu_custom_call.1} parent=27 // pred_fallthru
          _
        %s288 = sand.u32 %s106, 1
        %s289 = scalar_lea.sflag [#allocation4], %s288
        %s290 = sand.u32 %s106, 1
        %s291 = smul.addr %s290, 8
        %s292 = scalar_lea.vmem [#allocation7], %s291
        // Predicated region
        $region49: #{tpu_custom_call.1} parent=27 // pred_check
          %p293 = pneg %p116
        $region50: #{tpu_custom_call.1} parent=27 // pred_check_branch
          %295 = sbr.rel (%p293) target = $region52
        $region51: #{tpu_custom_call.1} parent=27 // pred_region
          %297 = vsyncadd %s289, 0
          %s298 = smul.addr %s26, 8
          %s299 = scalar_lea.hbm %s2, %s298
          %s301 = sshll.u32 %s292, 4
          %s302 = int_to_ptr.vmem [resolvable:$true] %s301
          %s303 = sshll.u32 %s299, 4
          %s304 = int_to_ptr.hbm [resolvable:$true] %s303
          %306 = dma.vmem_to_hbm [thread:$0]  %s302, 128, %s304, %s289
        $region52: #{tpu_custom_call.1} parent=27 // pred_fallthru
          _
      $region28: #{tpu_custom_call.1} parent=5 // pred_fallthru
        _
      %p307 = scmp.le.s32.totalorder 2, %s17
      // Predicated region
      $region53: #{tpu_custom_call.1} parent=5 // pred_check
        %p308 = pneg %p307
      $region54: #{tpu_custom_call.1} parent=5 // pred_check_branch
        %310 = sbr.rel (%p308) target = $region56
      $region55: #{tpu_custom_call.1} parent=5 // pred_region
        %s311 = ssub.s32 %s17, 2
        // Predicated region
        $region57: #{tpu_custom_call.1} parent=55 // pred_check
          %p312 = pneg %p122
        $region58: #{tpu_custom_call.1} parent=55 // pred_check_branch
          %314 = sbr.rel (%p312) target = $region60
        $region59: #{tpu_custom_call.1} parent=55 // pred_region
          %s315 = sand.u32 %s107, 1
          %s316 = scalar_lea.sflag [#allocation4], %s315
          %s317 = sand.u32 %s107, 1
          %s318 = smul.addr %s317, 8
          %s319 = scalar_lea.vmem [#allocation7], %s318
          %321 = dma.done %s316, 128
        $region60: #{tpu_custom_call.1} parent=55 // pred_fallthru
          _
      $region56: #{tpu_custom_call.1} parent=5 // pred_fallthru
        _
    $region6: #{tpu_custom_call.1} parent=1 // loop_footer
      %s21 = sadd.s32 1, %s17
    $region7: #{tpu_custom_call.1} parent=1 // loop_footer_branch
      %16 = sbr.rel target = $region3
    $region8: #{tpu_custom_call.1} parent=1 // loop_exit
      _
    %322 = vsyncpa [#allocation3], 1
    %s323 = scalar_lea.sflag [#allocation3], 1
    %324 = vsyncpa %s323, 1
    %325 = vsyncpa [#allocation6], 1
    %s326 = scalar_lea.sflag [#allocation6], 1
    %327 = vsyncpa %s326, 1
    %328 = vsyncpa [#allocation4], 1
    %s329 = scalar_lea.sflag [#allocation4], 1
    %330 = vsyncpa %s329, 1

</llo_original>
